<compile_context>
chip_gen: v6e
topology: v6e:2x2x1
jax: 0.10.0
libtpu: 0.0.40
codegen_flags: <defaults>
</compile_context>

<pallas_src>
import functools

import jax
import jax.numpy as jnp
from jax.experimental import pallas as pl
from jax.experimental.pallas import tpu as pltpu

LANES = 128
SUBLANES = 8


def _default_n_splits():
    """2 grid splits on dual-TensorCore chips (v7x), else 1."""
    try:
        kind = jax.devices()[0].device_kind.lower()
    except Exception:
        return 1
    return 2 if "v7" in kind else 1


def _huber_kernel(pred_ref, true_ref, out_ref, acc_ref, *,
                  delta, rows, row_tile, steps_per_split, ragged):
    p = pl.program_id(0)   # parallel split (TensorCore on v7x)
    j = pl.program_id(1)   # sequential reduction steps within the split

    @pl.when(j == 0)
    def _init():
        acc_ref[...] = jnp.zeros_like(acc_ref)

    # Upcast the native-dtype tiles (e.g. bf16) to f32 in-kernel; all Huber
    # arithmetic stays in f32.
    diff = pred_ref[...].astype(jnp.float32) - true_ref[...].astype(jnp.float32)
    abs_err = jnp.abs(diff)
    quadratic = jnp.minimum(abs_err, jnp.float32(delta))
    linear = abs_err - quadratic
    loss = 0.5 * quadratic * quadratic + jnp.float32(delta) * linear

    def accumulate(x):
        if row_tile % SUBLANES == 0:
            # (8,128)-tile-aligned reshape -> free relayout; leading-axis sum
            # is one VPU add per vreg.
            # TODO(synk): confirm via pl.lower_as_mlir that no VMEM copy is
            # materialized for this reshape.
            acc_ref[...] += jnp.sum(
                x.reshape(row_tile // SUBLANES, SUBLANES, LANES), axis=0)
        else:
            # Tiny single-block case (row_tile == rows, not a multiple of 8).
            acc_ref[0:1, :] = acc_ref[0:1, :] + jnp.sum(x, axis=0, keepdims=True)

    if ragged:
        # Exactly one step in the whole grid is ragged: the globally last one.
        is_last = jnp.logical_and(p == pl.num_programs(0) - 1,
                                  j == pl.num_programs(1) - 1)

        @pl.when(jnp.logical_not(is_last))
        def _steady():
            accumulate(loss)

        @pl.when(is_last)
        def _ragged_step():
            # Scalar row limit (scalar-unit math); one vector compare+select.
            # jnp.where is a select, so NaN/Inf garbage in OOB rows is safe.
            limit = rows - (p * steps_per_split + j) * row_tile
            row_ids = jax.lax.broadcasted_iota(jnp.int32, (row_tile, LANES), 0)
            accumulate(jnp.where(row_ids < limit, loss, jnp.float32(0.0)))
    else:
        accumulate(loss)

    @pl.when(j == pl.num_programs(1) - 1)
    def _finalize():
        out_ref[0] = acc_ref[...]


def huber_loss(y_pred, y_true, delta=1.0, *, row_tile=2048, n_splits=None):
    assert y_pred.shape == y_true.shape, "y_pred / y_true must match shapes"
    n = int(y_pred.size)
    assert n > 0

    pred_flat = jnp.ravel(y_pred)   # free reshape of the contiguous input
    true_flat = jnp.ravel(y_true)

    tail = n % LANES
    n_main = n - tail
    rows = n_main // LANES

    if n_splits is None:
        n_splits = _default_n_splits()

    total = jnp.float32(0.0)

    if rows > 0:
        # Copy-free when tail == 0 (full slice folds away); only genuinely
        # ragged inputs pay for the prefix slice, never a full jnp.pad copy.
        if tail:
            pred2d = pred_flat[:n_main].reshape(rows, LANES)
            true2d = true_flat[:n_main].reshape(rows, LANES)
        else:
            pred2d = pred_flat.reshape(rows, LANES)
            true2d = true_flat.reshape(rows, LANES)

        # Block sizing: either one full-array block, or a multiple of 16 rows
        # (bf16-safe sublane packing; also a multiple of 8 for f32).
        row_tile_eff = int(row_tile)
        if row_tile_eff >= rows:
            row_tile_eff = rows
        else:
            row_tile_eff = max(16, (row_tile_eff // 16) * 16)
            if row_tile_eff >= rows:
                row_tile_eff = rows

        steps_total = pl.cdiv(rows, row_tile_eff)
        n_splits_eff = max(1, min(int(n_splits), steps_total))
        while steps_total % n_splits_eff != 0:   # exact split -> no clamping
            n_splits_eff -= 1
        steps_per_split = steps_total // n_splits_eff
        ragged = (rows % row_tile_eff) != 0

        kernel = functools.partial(
            _huber_kernel,
            delta=float(delta),
            rows=rows,
            row_tile=row_tile_eff,
            steps_per_split=steps_per_split,
            ragged=ragged,
        )

        # Raise the scoped-VMEM limit only when the requested tiles need it
        # (2 inputs x 2 pipeline buffers); default 2048-row tiles never do.
        itemsize = pred2d.dtype.itemsize + true2d.dtype.itemsize
        buf_bytes = 2 * row_tile_eff * LANES * itemsize
        compiler_kwargs = dict(dimension_semantics=("parallel", "arbitrary"))
        if buf_bytes > (12 << 20):
            compiler_kwargs["vmem_limit_bytes"] = int(buf_bytes * 1.5) + (2 << 20)

        def in_map(p, j):
            return (p * steps_per_split + j, 0)

        partials = pl.pallas_call(
            kernel,
            out_shape=jax.ShapeDtypeStruct(
                (n_splits_eff, SUBLANES, LANES), jnp.float32),
            grid_spec=pltpu.PrefetchScalarGridSpec(
                num_scalar_prefetch=0,
                grid=(n_splits_eff, steps_per_split),
                in_specs=[
                    pl.BlockSpec((row_tile_eff, LANES), in_map),
                    pl.BlockSpec((row_tile_eff, LANES), in_map),
                ],
                out_specs=pl.BlockSpec((1, SUBLANES, LANES),
                                       lambda p, j: (p, 0, 0)),
                scratch_shapes=[pltpu.VMEM((SUBLANES, LANES), jnp.float32)],
            ),
            compiler_params=pltpu.CompilerParams(**compiler_kwargs),
        )(pred2d, true2d)

        total = total + jnp.sum(partials)   # single tiny cross-lane reduction

    if tail > 0:
        # < 128-element tail: trivial jnp reduction, avoids padding copies.
        tp = pred_flat[n_main:].astype(jnp.float32)
        tt = true_flat[n_main:].astype(jnp.float32)
        t_abs = jnp.abs(tp - tt)
        t_quad = jnp.minimum(t_abs, jnp.float32(delta))
        t_lin = t_abs - t_quad
        total = total + jnp.sum(0.5 * t_quad * t_quad + jnp.float32(delta) * t_lin)

    return total / jnp.float32(n)


def huber_loss_ref(y_pred, y_true, delta=1.0):
    y_pred = y_pred.astype(jnp.float32)
    y_true = y_true.astype(jnp.float32)
    abs_err = jnp.abs(y_pred - y_true)
    quadratic = jnp.minimum(abs_err, delta)
    linear = abs_err - quadratic
    return jnp.mean(0.5 * quadratic**2 + delta * linear)


if __name__ == "__main__":
    key = jax.random.PRNGKey(0)
    k1, k2, k3, k4, k5, k6, k7, k8 = jax.random.split(key, 8)

    # 1) NCHW-style small shapes: batch=2, channels=4, spatial=16x16 (f32).
    y_pred = jax.random.normal(k1, (2, 4, 16, 16), dtype=jnp.float32) * 2.0
    y_true = jax.random.normal(k2, (2, 4, 16, 16), dtype=jnp.float32)
    loss = jax.block_until_ready(huber_loss(y_pred, y_true, delta=1.0))
    ref = jax.block_until_ready(huber_loss_ref(y_pred, y_true, delta=1.0))
    assert jnp.allclose(loss, ref, rtol=1e-5, atol=1e-6), (loss, ref)

    # 2) Native bf16 inputs (no wrapper cast; in-kernel upcast to f32).
    yp_bf = y_pred.astype(jnp.bfloat16)
    yt_bf = y_true.astype(jnp.bfloat16)
    loss_bf = jax.block_until_ready(huber_loss(yp_bf, yt_bf, delta=1.0))
    ref_bf = jax.block_until_ready(huber_loss_ref(yp_bf, yt_bf, delta=1.0))
    assert jnp.allclose(loss_bf, ref_bf, rtol=1e-5, atol=1e-6), (loss_bf, ref_bf)

    # 3) Awkward size (not a multiple of 128): wrapper tail path + tiny block.
    a = jax.random.normal(k3, (3, 5, 41), dtype=jnp.float32)
    b = jax.random.normal(k4, (3, 5, 41), dtype=jnp.float32)
    loss2 = jax.block_until_ready(huber_loss(a, b, delta=0.7))
    ref2 = jax.block_until_ready(huber_loss_ref(a, b, delta=0.7))
    assert jnp.allclose(loss2, ref2, rtol=1e-5, atol=1e-6), (loss2, ref2)

    # 4) Multi-step grid with ragged last block: exercises the in-kernel mask
    #    (only the final step runs the masked path).
    c = jax.random.normal(k5, (2, 4, 8, 80), dtype=jnp.float32)
    d = jax.random.normal(k6, (2, 4, 8, 80), dtype=jnp.float32)
    loss3 = jax.block_until_ready(huber_loss(c, d, delta=1.3, row_tile=16))
    ref3 = jax.block_until_ready(huber_loss_ref(c, d, delta=1.3))
    assert jnp.allclose(loss3, ref3, rtol=1e-5, atol=1e-6), (loss3, ref3)

    # 5) Multi-step, exactly-divisible grid (no mask anywhere, possibly split
    #    across two TensorCores on v7x).
    e = jax.random.normal(k7, (2, 4, 32, 32), dtype=jnp.float32)
    f = jax.random.normal(k8, (2, 4, 32, 32), dtype=jnp.float32)
    loss4 = jax.block_until_ready(huber_loss(e, f, delta=0.9, row_tile=16))
    ref4 = jax.block_until_ready(huber_loss_ref(e, f, delta=0.9))
    assert jnp.allclose(loss4, ref4, rtol=1e-5, atol=1e-6), (loss4, ref4)

    print("KERNEL_OK")
</pallas_src>

<mosaic_0001>
module attributes {stable_mosaic.version = 11 : i64} {
  func.func @_huber_kernel(%arg0: i32, %arg1: i32, %arg2: memref<16x128xf32, #tpu.memory_space<vmem>>, %arg3: memref<16x128xf32, #tpu.memory_space<vmem>>, %arg4: memref<1x8x128xf32, #tpu.memory_space<vmem>>, %arg5: memref<8x128xf32, #tpu.memory_space<vmem>>) attributes {dimension_semantics = [#tpu.dimension_semantics<parallel>, #tpu.dimension_semantics<arbitrary>], iteration_bounds = array<i64: 1, 1>, scalar_prefetch = 0 : i64, scratch_operands = 1 : i64, tpu.core_type = #tpu.core_type<tc>, window_params = [{transform_indices = @transform_0, window_bounds = array<i64: 16, 128>}, {transform_indices = @transform_1, window_bounds = array<i64: 16, 128>}, {transform_indices = @transform_2, window_bounds = array<i64: 1, 8, 128>}]} {
    %c0_i32 = arith.constant 0 : i32
    %0 = arith.cmpi eq, %arg1, %c0_i32 : i32
    %1 = arith.extui %0 : i1 to i32
    %c0_i32_0 = arith.constant 0 : i32
    %2 = arith.cmpi ne, %1, %c0_i32_0 : i32
    scf.if %2 {
      %cst_13 = arith.constant 0.000000e+00 : f32
      %24 = vector.broadcast %cst_13 : f32 to vector<8x128xf32>
      %c0_14 = arith.constant 0 : index
      %c0_15 = arith.constant 0 : index
      %25 = vector.load %arg5[%c0_14, %c0_15] : memref<8x128xf32, #tpu.memory_space<vmem>>, vector<8x128xf32>
      tpu.vector_store %arg5[%c0_14, %c0_15], %24 {strides = array<i32>} : memref<8x128xf32, #tpu.memory_space<vmem>>, vector<8x128xf32>,
    } else {
    }
    %c0 = arith.constant 0 : index
    %c0_1 = arith.constant 0 : index
    %3 = vector.load %arg2[%c0, %c0_1] : memref<16x128xf32, #tpu.memory_space<vmem>>, vector<16x128xf32>
    %c0_2 = arith.constant 0 : index
    %c0_3 = arith.constant 0 : index
    %4 = vector.load %arg3[%c0_2, %c0_3] : memref<16x128xf32, #tpu.memory_space<vmem>>, vector<16x128xf32>
    %5 = arith.subf %3, %4 : vector<16x128xf32>
    %6 = math.absf %5 : vector<16x128xf32>
    %cst = arith.constant 1.000000e+00 : f32
    %7 = vector.broadcast %cst : f32 to vector<16x128xf32>
    %8 = arith.minimumf %6, %7 : vector<16x128xf32>
    %9 = arith.subf %6, %8 : vector<16x128xf32>
    %cst_4 = arith.constant 5.000000e-01 : f32
    %10 = vector.broadcast %cst_4 : f32 to vector<16x128xf32>
    %11 = arith.mulf %10, %8 : vector<16x128xf32>
    %12 = arith.mulf %11, %8 : vector<16x128xf32>
    %cst_5 = arith.constant 1.000000e+00 : f32
    %13 = vector.broadcast %cst_5 : f32 to vector<16x128xf32>
    %14 = arith.mulf %13, %9 : vector<16x128xf32>
    %15 = arith.addf %12, %14 : vector<16x128xf32>
    %c0_6 = arith.constant 0 : index
    %c0_7 = arith.constant 0 : index
    %16 = vector.load %arg5[%c0_6, %c0_7] : memref<8x128xf32, #tpu.memory_space<vmem>>, vector<8x128xf32>
    %17 = vector.shape_cast %15 : vector<16x128xf32> to vector<2x8x128xf32>
    %cst_8 = arith.constant dense<0.000000e+00> : vector<8x128xf32>
    %18 = vector.multi_reduction <add>, %17, %cst_8 [0] : vector<2x8x128xf32> to vector<8x128xf32>
    %19 = arith.addf %16, %18 : vector<8x128xf32>
    %c0_9 = arith.constant 0 : index
    %c0_10 = arith.constant 0 : index
    %20 = vector.load %arg5[%c0_9, %c0_10] : memref<8x128xf32, #tpu.memory_space<vmem>>, vector<8x128xf32>
    tpu.vector_store %arg5[%c0_9, %c0_10], %19 {strides = array<i32>} : memref<8x128xf32, #tpu.memory_space<vmem>>, vector<8x128xf32>,
    %c0_i32_11 = arith.constant 0 : i32
    %21 = arith.cmpi eq, %arg1, %c0_i32_11 : i32
    %22 = arith.extui %21 : i1 to i32
    %c0_i32_12 = arith.constant 0 : i32
    %23 = arith.cmpi ne, %22, %c0_i32_12 : i32
    scf.if %23 {
      %c0_13 = arith.constant 0 : index
      %c0_14 = arith.constant 0 : index
      %24 = vector.load %arg5[%c0_13, %c0_14] : memref<8x128xf32, #tpu.memory_space<vmem>>, vector<8x128xf32>
      %c0_15 = arith.constant 0 : index
      %c0_16 = arith.constant 0 : index
      %c0_17 = arith.constant 0 : index
      %25 = vector.load %arg4[%c0_15, %c0_16, %c0_17] : memref<1x8x128xf32, #tpu.memory_space<vmem>>, vector<1x8x128xf32>
      %26 = vector.shape_cast %25 : vector<1x8x128xf32> to vector<8x128xf32>
      %27 = vector.shape_cast %24 : vector<8x128xf32> to vector<1x8x128xf32>
      tpu.vector_store %arg4[%c0_15, %c0_16, %c0_17], %27 {strides = array<i32>} : memref<1x8x128xf32, #tpu.memory_space<vmem>>, vector<1x8x128xf32>,
    } else {
    }
    return
  }
  func.func @transform_0(%arg0: i32, %arg1: i32) -> (i32, i32) {
    %c1_i32 = arith.constant 1 : i32
    %0 = arith.muli %arg0, %c1_i32 : i32
    %1 = arith.addi %0, %arg1 : i32
    %c0_i32 = arith.constant 0 : i32
    %c0_i32_0 = arith.constant 0 : i32
    return %1, %c0_i32 : i32, i32
  }
  func.func @transform_1(%arg0: i32, %arg1: i32) -> (i32, i32) {
    %c1_i32 = arith.constant 1 : i32
    %0 = arith.muli %arg0, %c1_i32 : i32
    %1 = arith.addi %0, %arg1 : i32
    %c0_i32 = arith.constant 0 : i32
    %c0_i32_0 = arith.constant 0 : i32
    return %1, %c0_i32 : i32, i32
  }
  func.func @transform_2(%arg0: i32, %arg1: i32) -> (i32, i32, i32) {
    %c0_i32 = arith.constant 0 : i32
    %c0_i32_0 = arith.constant 0 : i32
    %c0_i32_1 = arith.constant 0 : i32
    return %arg0, %c0_i32, %c0_i32_0 : i32, i32, i32
  }
}

</mosaic_0001>

<llo_original>
// kernel: tpu_custom_call.1
$region0: #{tpu_custom_call.1}
  #allocation0 [shape = 'u32[]', space=smem, size = 0x4, offset = 0x4, fixed_abs, tag = 'smem constant byte address 0x4 - core index']
  #allocation1 [shape = 'u32[144,128]{1,0:T(1,128)}', space=vmem, size = 0x12000, scoped, tag = 'internal scratch']
  #allocation2 [shape = 'f32[8,128]{1,0:T(8,128)}', space=vmem, size = 0x1000, scoped, tag = 'scratch operand']
  %s0 = inlined_call_operand.hbm [shape: f32[16,128], index: 0, kind: input, shape index: {}]
  %s1 = inlined_call_operand.hbm [shape: f32[16,128], index: 1, kind: input, shape index: {}]
  %s2 = inlined_call_operand.hbm [shape: f32[1,8,128], index: 2, kind: output, shape index: {}]
  %s3 = sld [smem:[#allocation0]]
  $region34: #{tpu_custom_call.1} parent=0
    _
  %s5 = ssub.s32 1, %s3
  %s6 = scalar_select 0, %s5, %s3
  $region1: #{tpu_custom_call.1} parent=0
    #allocation3 [shape = 'u8[8192]{0}', space=vmem, size = 0x2000, scoped, tag = 'input window, operand 0, single buffered']
    #allocation4 [shape = 's32[1]{0}', space=sflag, size = 0x4, scoped, tag = 'scoped memory for tpu_custom_call.1']
    #allocation5 [shape = 's32[1]{0}', space=sflag, size = 0x4, scoped, tag = 'scoped memory for tpu_custom_call.1']
    #allocation6 [shape = 'u8[8192]{0}', space=vmem, size = 0x2000, scoped, tag = 'input window, operand 1, single buffered']
    #allocation7 [shape = 's32[1]{0}', space=sflag, size = 0x4, scoped, tag = 'scoped memory for tpu_custom_call.1']
    #allocation8 [shape = 'u8[4096]{0}', space=vmem, size = 0x1000, scoped, tag = 'output window, operand 0, single buffered']
    %7 = vsyncpa [#allocation4], 0
    %8 = vsyncpa [#allocation7], 0
    %9 = vsyncpa [#allocation5], 0
    // Predicated region
    $region2: #{tpu_custom_call.1} parent=1 // pred_check
      _
    $region3: #{tpu_custom_call.1} parent=1 // pred_check_branch
      %11 = sbr.rel (0) target = $region5
    $region4: #{tpu_custom_call.1} parent=1 // pred_region
      %s12 = sadd.s32 0, 0
      %s13 = smul.u32 2, %s12
      %s15 = ssub.s32 256, 256
      %16 = vsyncadd [#allocation4], %s15
      %s17 = smul.addr %s13, 128
      %s18 = scalar_lea.hbm %s0, %s17
      %s19 = sshll.u32 [#allocation3], 4
      %s20 = int_to_ptr.vmem [resolvable:$true] %s19
      %25 = dma.hbm_to_vmem [thread:$0]  %s18, 256, %s20, [#allocation4], 128, 128, 8
    $region5: #{tpu_custom_call.1} parent=1 // pred_fallthru
      _
    // Predicated region
    $region6: #{tpu_custom_call.1} parent=1 // pred_check
      _
    $region7: #{tpu_custom_call.1} parent=1 // pred_check_branch
      %27 = sbr.rel (0) target = $region9
    $region8: #{tpu_custom_call.1} parent=1 // pred_region
      %s28 = sadd.s32 0, 0
      %s29 = smul.u32 2, %s28
      %s31 = ssub.s32 256, 256
      %32 = vsyncadd [#allocation7], %s31
      %s33 = smul.addr %s29, 128
      %s34 = scalar_lea.hbm %s1, %s33
      %s35 = sshll.u32 [#allocation6], 4
      %s36 = int_to_ptr.vmem [resolvable:$true] %s35
      %41 = dma.hbm_to_vmem [thread:$0]  %s34, 256, %s36, [#allocation7], 128, 128, 8
    $region9: #{tpu_custom_call.1} parent=1 // pred_fallthru
      _
    // Predicated region
    $region10: #{tpu_custom_call.1} parent=1 // pred_check
      _
    $region11: #{tpu_custom_call.1} parent=1 // pred_check_branch
      %43 = sbr.rel (0) target = $region13
    $region12: #{tpu_custom_call.1} parent=1 // pred_region
      %44 = dma.done [#allocation4], 256
    $region13: #{tpu_custom_call.1} parent=1 // pred_fallthru
      _
    // Predicated region
    $region14: #{tpu_custom_call.1} parent=1 // pred_check
      _
    $region15: #{tpu_custom_call.1} parent=1 // pred_check_branch
      %46 = sbr.rel (0) target = $region17
    $region16: #{tpu_custom_call.1} parent=1 // pred_region
      %47 = dma.done [#allocation7], 256
    $region17: #{tpu_custom_call.1} parent=1 // pred_fallthru
      _
    %s48 = sadd.s32 0, 0
    %s49 = smul.u32 2, %s48
    %s50 = sadd.s32 0, 0
    %s51 = smul.u32 2, %s50
    %p52 = scmp.eq.s32.totalorder 0, 0
    // Predicated region
    $region18: #{tpu_custom_call.1} parent=1 // pred_check
      %p53 = pneg %p52
    $region19: #{tpu_custom_call.1} parent=1 // pred_check_branch
      %55 = sbr.rel (%p53) target = $region21
    $region20: #{tpu_custom_call.1} parent=1 // pred_region
      %56 = vst [vmem:[#allocation2] sm:$0xff] 0.0
    $region21: #{tpu_custom_call.1} parent=1 // pred_fallthru
      _
    %v57 = vld [vmem:[#allocation3] sm:$0xff]
    %v58 = vld [vmem:[#allocation3 + $0x8] sm:$0xff]
    %v59 = vld [vmem:[#allocation6] sm:$0xff]
    %v60 = vld [vmem:[#allocation6 + $0x8] sm:$0xff]
    %v61 = vsub.f32 %v57, %v59
    %v62 = vsub.f32 %v58, %v60
    %v63 = vand.u32 2147483647, %v61
    %v64 = vand.u32 2147483647, %v62
    %v65 = vmin.f32 %v63, 1.0
    %v66 = vmin.f32 %v64, 1.0
    %v67 = vsub.f32 %v63, %v65
    %v68 = vsub.f32 %v64, %v66
    %v69 = vmul.f32 %v65, 0.5
    %v70 = vmul.f32 %v66, 0.5
    %v71 = vmul.f32 %v69, %v65
    %v72 = vmul.f32 %v70, %v66
    %v73 = vadd.f32 %v71, %v67
    %v74 = vadd.f32 %v72, %v68
    %v75 = vld [vmem:[#allocation2] sm:$0xff]
    %v76 = vadd.f32 %v73, %v74
    %v77 = vadd.f32 %v75, %v76
    %78 = vst [vmem:[#allocation2] sm:$0xff] %v77
    // Predicated region
    $region22: #{tpu_custom_call.1} parent=1 // pred_check
      %p79 = pneg %p52
    $region23: #{tpu_custom_call.1} parent=1 // pred_check_branch
      %81 = sbr.rel (%p79) target = $region25
    $region24: #{tpu_custom_call.1} parent=1 // pred_region
      %v82 = vld [vmem:[#allocation2] sm:$0xff]
      %83 = vst [vmem:[#allocation8] sm:$0xff] %v82
    $region25: #{tpu_custom_call.1} parent=1 // pred_fallthru
      _
    // Predicated region
    $region26: #{tpu_custom_call.1} parent=1 // pred_check
      _
    $region27: #{tpu_custom_call.1} parent=1 // pred_check_branch
      %85 = sbr.rel (0) target = $region29
    $region28: #{tpu_custom_call.1} parent=1 // pred_region
      %s87 = ssub.s32 128, 128
      %88 = vsyncadd [#allocation5], %s87
      %s90 = sshll.u32 [#allocation8], 4
      %s91 = int_to_ptr.vmem [resolvable:$true] %s90
      %93 = dma.vmem_to_hbm [thread:$0]  %s91, 128, %s2, [#allocation5]
    $region29: #{tpu_custom_call.1} parent=1 // pred_fallthru
      _
    // Predicated region
    $region30: #{tpu_custom_call.1} parent=1 // pred_check
      _
    $region31: #{tpu_custom_call.1} parent=1 // pred_check_branch
      %95 = sbr.rel (0) target = $region33
    $region32: #{tpu_custom_call.1} parent=1 // pred_region
      %96 = dma.done [#allocation5], 128
    $region33: #{tpu_custom_call.1} parent=1 // pred_fallthru
      _
    %97 = vsyncpa [#allocation4], 1
    %98 = vsyncpa [#allocation7], 1
    %99 = vsyncpa [#allocation5], 1

</llo_original>
